<compile_context>
chip_gen: v5e
topology: v5e:2x2
jax: 0.10.0
libtpu: 0.0.40
codegen_flags: <defaults>
</compile_context>

<pallas_src>
import jax
import jax.numpy as jnp
from jax.experimental import pallas as pl
from jax.experimental.pallas import tpu as pltpu

_LANES = 128
_BLOCK_BYTES = 8 * 1024 * 1024        # ~8 MiB blocks
_VMEM_LIMIT = 48 * 1024 * 1024        # covers 4 x 8 MiB double-buffered slabs
_SMALL_ODD_BYTES = 8 * 1024 * 1024    # odd tensors up to this: one VMEM block


def _h_swish_kernel(x_ref, o_ref):
    x = x_ref[...]
    dt = x.dtype
    three = jnp.asarray(3.0, dtype=dt)
    six = jnp.asarray(6.0, dtype=dt)
    zero = jnp.asarray(0.0, dtype=dt)
    clamped = jnp.minimum(jnp.maximum(x + three, zero), six)  # relu6(x + 3)
    o_ref[...] = x * clamped / six


def _num_tensorcores() -> int:
    """2 on v7x-class chips (worth forcing an even grid), else 1."""
    try:
        kind = jax.devices()[0].device_kind.lower()
    except Exception:
        return 1
    return 2 if ("v7" in kind or "7x" in kind) else 1


def _force_even_steps(rows: int, tr: int, sub_mult: int) -> int:
    """Shrink tr (multiple of sub_mult) until cdiv(rows, tr) is even and >= 2."""
    for _ in range(8):
        steps = -(-rows // tr)
        if steps >= 2 and steps % 2 == 0:
            return tr
        target = max(2, steps + (steps % 2))
        new_tr = -(-rows // target)
        new_tr = -(-new_tr // sub_mult) * sub_mult
        if new_tr >= tr:
            new_tr = tr - sub_mult
        if new_tr < sub_mult:
            return tr            # cannot split below one sublane tile
        tr = new_tr
    return tr


def h_swish(x: jax.Array, *, block_bytes: int = _BLOCK_BYTES) -> jax.Array:
    """Elementwise hard-swish, exact semantics of the PyTorch module."""
    orig_shape = x.shape
    dtype = x.dtype
    n = x.size
    if n == 0:
        return x

    itemsize = jnp.dtype(dtype).itemsize
    cost = pl.CostEstimate(flops=4 * n, transcendentals=0,
                           bytes_accessed=2 * n * itemsize)
    grid_params = pltpu.CompilerParams(
        dimension_semantics=("parallel",),
        vmem_limit_bytes=_VMEM_LIMIT,
    )

    flat = x.reshape(-1)  # free (contiguous row-major bitcast)

    if n % _LANES != 0:
        # Odd-sized tensors: avoid pad + [:n] slice (each a full HBM round-trip).
        if n * itemsize <= _SMALL_ODD_BYTES:
            out = pl.pallas_call(
                _h_swish_kernel,
                out_shape=jax.ShapeDtypeStruct((n,), dtype),
                compiler_params=pltpu.CompilerParams(
                    vmem_limit_bytes=_VMEM_LIMIT),
                cost_estimate=cost,
            )(flat)
        else:
            tb = max((block_bytes // itemsize) // (8 * _LANES) * (8 * _LANES),
                     8 * _LANES)
            out = pl.pallas_call(
                _h_swish_kernel,
                out_shape=jax.ShapeDtypeStruct((n,), dtype),
                grid_spec=pltpu.PrefetchScalarGridSpec(
                    num_scalar_prefetch=0,
                    grid=(pl.cdiv(n, tb),),
                    in_specs=[pl.BlockSpec((tb,), lambda i: (i,))],
                    out_specs=pl.BlockSpec((tb,), lambda i: (i,)),
                ),
                compiler_params=grid_params,
                cost_estimate=cost,
            )(flat)
        return out.reshape(orig_shape)

    # Fast path: lane-dense 2-D view; widest lane width dividing n exactly.
    lane_w = _LANES
    for w in (2048, 1024, 512, 256, _LANES):
        if n % w == 0:
            lane_w = w
            break
    rows = n // lane_w
    x2d = flat.reshape(rows, lane_w)

    # sublane granularity: 8 for 32-bit, 16 for bf16, 32 for 8-bit dtypes
    sub_mult = max(8, 32 // max(1, itemsize))
    if rows <= sub_mult:
        tr = rows  # full-extent block (legal even if not a multiple of 8)
    else:
        tr = max((block_bytes // (lane_w * itemsize)) // sub_mult * sub_mult,
                 sub_mult)
        tr = min(tr, rows)
        if _num_tensorcores() >= 2:
            # v7x: even, >=2 grid so both TensorCores get balanced work.
            tr = _force_even_steps(rows, tr, sub_mult)
    grid = (pl.cdiv(rows, tr),)

    out2d = pl.pallas_call(
        _h_swish_kernel,
        out_shape=jax.ShapeDtypeStruct((rows, lane_w), dtype),
        grid_spec=pltpu.PrefetchScalarGridSpec(
            num_scalar_prefetch=0,
            grid=grid,
            in_specs=[pl.BlockSpec((tr, lane_w), lambda i: (i, 0))],
            out_specs=pl.BlockSpec((tr, lane_w), lambda i: (i, 0)),
        ),
        compiler_params=grid_params,
        cost_estimate=cost,
    )(x2d)
    return out2d.reshape(orig_shape)


def _h_swish_ref(x):
    return x * (jnp.clip(x + 3.0, 0.0, 6.0) / 6.0)


if __name__ == "__main__":
    key = jax.random.PRNGKey(0)

    # NCHW input, matching typical use of h_swish inside attention blocks.
    x = jax.random.normal(key, (2, 4, 16, 16), dtype=jnp.float32) * 4.0
    y = jax.block_until_ready(h_swish(x))
    y_ref = _h_swish_ref(x)
    assert y.shape == x.shape and y.dtype == x.dtype
    assert jnp.allclose(y, y_ref, atol=1e-5, rtol=1e-5), "mismatch vs reference"

    # Odd shape: exercises the no-pad odd-size path (single full-extent block).
    x2 = jax.random.normal(jax.random.PRNGKey(1), (2, 3, 17, 19),
                           dtype=jnp.float32) * 4.0
    y2 = jax.block_until_ready(h_swish(x2))
    y2_ref = _h_swish_ref(x2)
    assert y2.shape == x2.shape and y2.dtype == x2.dtype
    assert jnp.allclose(y2, y2_ref, atol=1e-5, rtol=1e-5), \
        "mismatch vs reference (odd shape)"

    print("KERNEL_OK")
</pallas_src>

<mosaic_0001>
module attributes {stable_mosaic.version = 11 : i64} {
  func.func @_h_swish_kernel(%arg0: i32, %arg1: memref<1x2048xf32, #tpu.memory_space<vmem>>, %arg2: memref<1x2048xf32, #tpu.memory_space<vmem>>) attributes {dimension_semantics = [#tpu.dimension_semantics<parallel>], iteration_bounds = array<i64: 1>, scalar_prefetch = 0 : i64, scratch_operands = 0 : i64, tpu.core_type = #tpu.core_type<tc>, window_params = [{transform_indices = @transform_0, window_bounds = array<i64: 1, 2048>}, {transform_indices = @transform_1, window_bounds = array<i64: 1, 2048>}]} {
    %c0 = arith.constant 0 : index
    %c0_0 = arith.constant 0 : index
    %0 = vector.load %arg1[%c0, %c0_0] : memref<1x2048xf32, #tpu.memory_space<vmem>>, vector<1x2048xf32>
    %cst = arith.constant 3.000000e+00 : f32
    %1 = vector.broadcast %cst : f32 to vector<1x2048xf32>
    %2 = arith.addf %0, %1 : vector<1x2048xf32>
    %cst_1 = arith.constant 0.000000e+00 : f32
    %3 = vector.broadcast %cst_1 : f32 to vector<1x2048xf32>
    %4 = arith.maximumf %2, %3 : vector<1x2048xf32>
    %cst_2 = arith.constant 6.000000e+00 : f32
    %5 = vector.broadcast %cst_2 : f32 to vector<1x2048xf32>
    %6 = arith.minimumf %4, %5 : vector<1x2048xf32>
    %7 = arith.mulf %0, %6 : vector<1x2048xf32>
    %cst_3 = arith.constant 6.000000e+00 : f32
    %8 = vector.broadcast %cst_3 : f32 to vector<1x2048xf32>
    %9 = arith.divf %7, %8 : vector<1x2048xf32>
    %c0_4 = arith.constant 0 : index
    %c0_5 = arith.constant 0 : index
    %10 = vector.load %arg2[%c0_4, %c0_5] : memref<1x2048xf32, #tpu.memory_space<vmem>>, vector<1x2048xf32>
    tpu.vector_store %arg2[%c0_4, %c0_5], %9 {strides = array<i32>} : memref<1x2048xf32, #tpu.memory_space<vmem>>, vector<1x2048xf32>,
    return
  }
  func.func @transform_0(%arg0: i32) -> (i32, i32) {
    %c0_i32 = arith.constant 0 : i32
    %c0_i32_0 = arith.constant 0 : i32
    return %arg0, %c0_i32 : i32, i32
  }
  func.func @transform_1(%arg0: i32) -> (i32, i32) {
    %c0_i32 = arith.constant 0 : i32
    %c0_i32_0 = arith.constant 0 : i32
    return %arg0, %c0_i32 : i32, i32
  }
}

</mosaic_0001>

<llo_original>
// kernel: tpu_custom_call.1
$region0: #{tpu_custom_call.1}
  #allocation0 [shape = 'u32[]', space=smem, size = 0x4, offset = 0x4, fixed_abs, tag = 'smem constant byte address 0x4 - core index']
  #allocation1 [shape = 'u32[72,128]{1,0:T(1,128)}', space=vmem, size = 0x9000, scoped, tag = 'internal scratch']
  %s0 = inlined_call_operand.hbm [shape: f32[1,2048], index: 0, kind: input, shape index: {}]
  %s1 = inlined_call_operand.hbm [shape: f32[1,2048], index: 1, kind: output, shape index: {}]
  %s2 = sld [smem:[#allocation0]]
  $region18: #{tpu_custom_call.1} parent=0
    _
  %s4 = ssub.s32 1, %s2
  %s5 = scalar_select 0, %s4, %s2
  $region1: #{tpu_custom_call.1} parent=0
    #allocation2 [shape = 'u8[8192]{0}', space=vmem, size = 0x2000, scoped, tag = 'input window, operand 0, single buffered']
    #allocation3 [shape = 's32[1]{0}', space=sflag, size = 0x4, scoped, tag = 'scoped memory for tpu_custom_call.1']
    #allocation4 [shape = 's32[1]{0}', space=sflag, size = 0x4, scoped, tag = 'scoped memory for tpu_custom_call.1']
    #allocation5 [shape = 'u8[8192]{0}', space=vmem, size = 0x2000, scoped, tag = 'output window, operand 0, single buffered']
    %6 = vsyncpa [#allocation3], 0
    %7 = vsyncpa [#allocation4], 0
    // Predicated region
    $region2: #{tpu_custom_call.1} parent=1 // pred_check
      _
    $region3: #{tpu_custom_call.1} parent=1 // pred_check_branch
      %9 = sbr.rel (0) target = $region5
    $region4: #{tpu_custom_call.1} parent=1 // pred_region
      %11 = vsyncadd [#allocation3], 0
      %s13 = sshll.u32 %s0, 4
      %s14 = int_to_ptr.hbm [resolvable:$true] %s13
      %s15 = sshll.u32 [#allocation2], 4
      %s16 = int_to_ptr.vmem [resolvable:$true] %s15
      %18 = dma.hbm_to_vmem [thread:$0]  %s14, 256, %s16, [#allocation3]
    $region5: #{tpu_custom_call.1} parent=1 // pred_fallthru
      _
    // Predicated region
    $region6: #{tpu_custom_call.1} parent=1 // pred_check
      _
    $region7: #{tpu_custom_call.1} parent=1 // pred_check_branch
      %20 = sbr.rel (0) target = $region9
    $region8: #{tpu_custom_call.1} parent=1 // pred_region
      %22 = dma.done [#allocation3], 256
    $region9: #{tpu_custom_call.1} parent=1 // pred_fallthru
      _
    %v23 = vld [vmem:[#allocation2] sm:$0xff]
    %v24 = vld [vmem:[#allocation2 + $0x8] sm:$0xff]
    %v25 = vadd.f32 %v23, 3.0
    %v26 = vadd.f32 %v24, 3.0
    %v27 = vmax.f32 %v25, 0.0
    %v28 = vmax.f32 %v26, 0.0
    %v29 = vmin.f32 %v27, 6.0
    %v30 = vmin.f32 %v28, 6.0
    %v31 = vmul.f32 %v23, %v29
    %v32 = vmul.f32 %v24, %v30
    %v33 = vrcp.pop 6.0
    %v34 = vmul.f32 6.0, %v33
    %v35 = vsub.f32 1.0, %v34
    %v36 = vmul.f32 %v33, %v35
    %v37 = vadd.f32 %v33, %v36
    %vm38 = vweird.f32 %v33
    %v39 = vsel %vm38, %v33, %v37
    %v40 = vmul.f32 %v31, %v39
    %v41 = vmul.f32 %v32, %v39
    %42 = vst [vmem:[#allocation5] sm:$0xff] %v40
    %43 = vst [vmem:[#allocation5 + $0x8] sm:$0xff] %v41
    // Predicated region
    $region10: #{tpu_custom_call.1} parent=1 // pred_check
      _
    $region11: #{tpu_custom_call.1} parent=1 // pred_check_branch
      %45 = sbr.rel (0) target = $region13
    $region12: #{tpu_custom_call.1} parent=1 // pred_region
      %47 = vsyncadd [#allocation4], 0
      %s49 = sshll.u32 [#allocation5], 4
      %s50 = int_to_ptr.vmem [resolvable:$true] %s49
      %s51 = sshll.u32 %s1, 4
      %s52 = int_to_ptr.hbm [resolvable:$true] %s51
      %54 = dma.vmem_to_hbm [thread:$0]  %s50, 256, %s52, [#allocation4]
    $region13: #{tpu_custom_call.1} parent=1 // pred_fallthru
      _
    // Predicated region
    $region14: #{tpu_custom_call.1} parent=1 // pred_check
      _
    $region15: #{tpu_custom_call.1} parent=1 // pred_check_branch
      %56 = sbr.rel (0) target = $region17
    $region16: #{tpu_custom_call.1} parent=1 // pred_region
      %58 = dma.done [#allocation4], 256
    $region17: #{tpu_custom_call.1} parent=1 // pred_fallthru
      _
    %59 = vsyncpa [#allocation3], 1
    %60 = vsyncpa [#allocation4], 1

</llo_original>
